<compile_context>
chip_gen: v5e
topology: v5e:2x2
jax: 0.10.0
libtpu: 0.0.40
codegen_flags: <defaults>
</compile_context>

<pallas_src>
import functools

import jax
import jax.numpy as jnp
from jax import lax
from jax.experimental import pallas as pl
from jax.experimental.pallas import tpu as pltpu


def _round_up(x, m):
    return ((x + m - 1) // m) * m


def _tile_bytes(rows, cols, itemsize):
    # Conservative VMEM footprint of a 2D slab after (sublane, lane) padding.
    return _round_up(rows, 8) * _round_up(cols, 128) * itemsize


# ------------------- Kernel A: Chebyshev basis stack (tiny, one-off) -------------------
def _cheby_basis_kernel(adj_ref, t_ref, *, K, N):
    adj = adj_ref[...].astype(jnp.float32)
    row = lax.broadcasted_iota(jnp.int32, (N, N), 0)
    col = lax.broadcasted_iota(jnp.int32, (N, N), 1)
    eye = jnp.where(row == col, 1.0, 0.0).astype(jnp.float32)
    t_ref[pl.ds(0, N), :] = eye
    t_ref[pl.ds(N, N), :] = adj
    l0, l1 = eye, adj
    for k in range(2, K):  # static unroll, K is small
        l2 = 2.0 * jnp.dot(adj, l1, preferred_element_type=jnp.float32) - l0
        t_ref[pl.ds(k * N, N), :] = l2
        l0, l1 = l1, l2


def _cheby_basis(adj, K):
    N = adj.shape[0]
    kernel = functools.partial(_cheby_basis_kernel, K=K, N=N)
    return pl.pallas_call(
        kernel,
        out_shape=jax.ShapeDtypeStruct((K * N, N), jnp.float32),
        in_specs=[pl.BlockSpec((N, N), lambda: (0, 0))],
        out_specs=pl.BlockSpec((K * N, N), lambda: (0, 0)),
    )(adj)


# ------------- Kernel B: fused propagation + 1x1 conv (+ bias), batch-tiled -------------
def _fused_cheby_conv_kernel(wbig_ref, bias_ref, x_ref, o_ref):
    w = wbig_ref[...]                 # (c_out*N, C*N), resident across grid steps
    bias = bias_ref[...]              # (c_out*N, 1), f32, resident
    n_batch = x_ref.shape[0]
    for b in range(n_batch):          # static unroll over the batch block (<= 8)
        xb = x_ref[b].astype(w.dtype)                                  # (C*N, L)
        acc = jnp.dot(w, xb, preferred_element_type=jnp.float32)       # MXU, f32 acc
        acc = acc + bias
        o_ref[b] = acc.astype(o_ref.dtype)


def _pick_batch_block(B, per_batch_bytes, resident_bytes, budget_bytes):
    best = 1
    for cand in range(1, min(B, 8) + 1):
        if B % cand:
            continue
        if B >= 2 and (B // cand) < 2:
            continue  # keep >= 2 grid steps so v7x megacore gets balanced work
        if resident_bytes + 2 * cand * per_batch_bytes <= budget_bytes:
            best = cand
    return best


def cheby_conv_forward(x, adj, weight, bias, K, matmul_dtype=None):
    """x: (B, C, N, L); adj: (N, N); weight: (c_out, K*C, 1, 1); bias: (c_out,).

    matmul_dtype: None keeps the input dtype on the MXU; jnp.bfloat16 casts the matmul
    operands only (f32 accumulation) for v6e/v7x MXU peak rate.
    """
    B, C, N, L = x.shape
    c_out = weight.shape[0]
    dtype = x.dtype
    assert K >= 2, "cheby_conv requires K >= 2 (reference always stacks I and adj)"
    assert weight.shape[1] == K * C
    assert adj.shape == (N, N)

    # (1) Chebyshev basis T_k(adj) (Pallas, f32 recursion; rows k*N+q hold T_k[q, :]).
    t_stack = _cheby_basis(adj, K)                       # (K*N, N)
    t3 = t_stack.reshape(K, N, N)                        # free reshape

    # (2) One-off fused weight ("W_big" formulation, reviewer-endorsed to stay in XLA):
    #     W_big[o*N+q, c*N+n] = sum_k w[o, c*K+k] * T_k[q, n]
    #     out[b, o, q, l]     = sum_{c,n} W_big[(o,q),(c,n)] * x[b,c,n,l] + bias[o]
    w3 = weight.reshape(c_out, C, K).astype(jnp.float32)  # w3[o,c,k] == w2[o, c*K+k]
    w_big = jnp.einsum(
        "ock,kqn->oqcn", w3, t3, precision=lax.Precision.HIGHEST
    ).reshape(c_out * N, C * N)
    if matmul_dtype is not None:
        w_big = w_big.astype(matmul_dtype)               # halves resident bytes + MXU rate
    bias_rep = jnp.repeat(bias.astype(jnp.float32), N).reshape(c_out * N, 1)

    # (3) x in native layout: (B, C, N, L) -> (B, C*N, L) is a free metadata reshape
    #     (no wrapper-side HBM transpose pass).
    x_flat = x.reshape(B, C * N, L)

    # (4) VMEM budgeting (v7x has 64 MiB physical VMEM -> cap well below that).
    w_item = jnp.dtype(w_big.dtype).itemsize
    x_item = jnp.dtype(dtype).itemsize
    resident = 2 * (_tile_bytes(c_out * N, C * N, w_item) + _tile_bytes(c_out * N, 1, 4))
    per_batch = _tile_bytes(C * N, L, x_item) + _tile_bytes(c_out * N, L, x_item)
    budget = 40 * 1024 * 1024
    if resident + 2 * per_batch > budget:
        raise ValueError(
            "W_big does not fit the VMEM budget at these sizes; "
            "use the per-k fused-accumulation fallback instead."
        )
    b_blk = _pick_batch_block(B, per_batch, resident, budget)
    vmem_limit = int(
        min(48 * 1024 * 1024,
            max(16 * 1024 * 1024, resident + 2 * b_blk * per_batch + (4 << 20)))
    )

    out = pl.pallas_call(
        _fused_cheby_conv_kernel,
        out_shape=jax.ShapeDtypeStruct((B, c_out * N, L), dtype),
        grid=(B // b_blk,),
        in_specs=[
            pl.BlockSpec((c_out * N, C * N), lambda i: (0, 0)),   # W_big: resident
            pl.BlockSpec((c_out * N, 1), lambda i: (0, 0)),       # bias: resident
            pl.BlockSpec((b_blk, C * N, L), lambda i: (i, 0, 0)),
        ],
        out_specs=pl.BlockSpec((b_blk, c_out * N, L), lambda i: (i, 0, 0)),
        compiler_params=pltpu.CompilerParams(
            dimension_semantics=("parallel",),
            vmem_limit_bytes=vmem_limit,
        ),
    )(w_big, bias_rep, x_flat)

    # (B, c_out*N, L) -> (B, c_out, N, L) is a free metadata reshape.
    return out.reshape(B, c_out, N, L)


# ------------------------------- Plain-JAX reference -------------------------------------
def cheby_conv_ref(x, adj, weight, bias, K):
    B, C, N, L = x.shape
    c_out = weight.shape[0]
    l0 = jnp.eye(N, dtype=jnp.float32)
    l1 = adj.astype(jnp.float32)
    ls = [l0, l1]
    for _ in range(2, K):
        l2 = 2.0 * (adj @ l1) - l0
        l0, l1 = l1, l2
        ls.append(l2)
    lap = jnp.swapaxes(jnp.stack(ls, 0), -1, -2)           # (K, N, N), transposed
    xe = jnp.einsum("bcnl,knq->bckql", x, lap)             # (B, C, K, N, L)
    xe = xe.reshape(B, C * K, N, L)
    w2 = weight.reshape(c_out, -1)
    out = jnp.einsum("oc,bcnl->bonl", w2, xe) + bias.reshape(1, c_out, 1, 1)
    return out


if __name__ == "__main__":
    # Keep XLA-side f32 matmuls in full precision so kernel vs reference agree tightly.
    jax.config.update("jax_default_matmul_precision", "highest")

    key = jax.random.PRNGKey(0)
    k1, k2, k3, k4 = jax.random.split(key, 4)

    # Small shapes consistent with the module:
    # batch=2, c_in=4, c_out=8, nNode=16, tem_size=8, K=3 Chebyshev coefficients.
    B, C_in, C_out, N, L, K = 2, 4, 8, 16, 8, 3

    x = jax.random.normal(k1, (B, C_in, N, L), dtype=jnp.float32)
    adj = jax.random.uniform(k2, (N, N), dtype=jnp.float32, minval=-0.5, maxval=0.5)
    weight = 0.1 * jax.random.normal(k3, (C_out, K * C_in, 1, 1), dtype=jnp.float32)
    bias = 0.1 * jax.random.normal(k4, (C_out,), dtype=jnp.float32)

    fwd = jax.jit(cheby_conv_forward, static_argnums=(4, 5))
    ref = cheby_conv_ref(x, adj, weight, bias, K)

    # f32 path (default): tight tolerance vs the reference.
    out = fwd(x, adj, weight, bias, K, None)
    jax.block_until_ready(out)
    assert out.shape == (B, C_out, N, L), out.shape
    err_f32 = float(jnp.max(jnp.abs(out - ref)))
    assert jnp.allclose(out, ref, rtol=1e-4, atol=1e-4), err_f32

    # bf16-matmul path (v6e/v7x MXU-rate option): f32 accumulation, looser tolerance.
    out_bf16 = fwd(x, adj, weight, bias, K, jnp.bfloat16)
    jax.block_until_ready(out_bf16)
    err_bf16 = float(jnp.max(jnp.abs(out_bf16 - ref)))
    assert jnp.allclose(out_bf16, ref, rtol=5e-2, atol=5e-2), err_bf16

    print("KERNEL_OK")
</pallas_src>

<mosaic_0001>
module attributes {stable_mosaic.version = 11 : i64} {
  func.func @_cheby_basis_kernel(%arg0: memref<16x16xf32, #tpu.memory_space<vmem>>, %arg1: memref<48x16xf32, #tpu.memory_space<vmem>>) attributes {dimension_semantics = [], scalar_prefetch = 0 : i64, scratch_operands = 0 : i64, tpu.core_type = #tpu.core_type<tc>} {
    %c0 = arith.constant 0 : index
    %c0_0 = arith.constant 0 : index
    %0 = vector.load %arg0[%c0, %c0_0] : memref<16x16xf32, #tpu.memory_space<vmem>>, vector<16x16xf32>
    %1 = tpu.iota {dimensions = array<i32: 0>} : vector<16x16xi32>
    %2 = tpu.iota {dimensions = array<i32: 1>} : vector<16x16xi32>
    %3 = arith.cmpi eq, %1, %2 : vector<16x16xi32>
    %cst = arith.constant 1.000000e+00 : f32
    %cst_1 = arith.constant 0.000000e+00 : f32
    %4 = vector.broadcast %cst : f32 to vector<16x16xf32>
    %5 = vector.broadcast %cst_1 : f32 to vector<16x16xf32>
    %6 = arith.select %3, %4, %5 : vector<16x16xi1>, vector<16x16xf32>
    %c0_2 = arith.constant 0 : index
    %c0_3 = arith.constant 0 : index
    %7 = vector.load %arg1[%c0_2, %c0_3] : memref<48x16xf32, #tpu.memory_space<vmem>>, vector<16x16xf32>
    tpu.vector_store %arg1[%c0_2, %c0_3], %6 {strides = array<i32>} : memref<48x16xf32, #tpu.memory_space<vmem>>, vector<16x16xf32>,
    %c16 = arith.constant 16 : index
    %c0_4 = arith.constant 0 : index
    %8 = vector.load %arg1[%c16, %c0_4] : memref<48x16xf32, #tpu.memory_space<vmem>>, vector<16x16xf32>
    tpu.vector_store %arg1[%c16, %c0_4], %0 {strides = array<i32>} : memref<48x16xf32, #tpu.memory_space<vmem>>, vector<16x16xf32>,
    %cst_5 = arith.constant dense<0.000000e+00> : vector<16x16xf32>
    %9 = tpu.matmul %0, %0, %cst_5 {dimension_numbers = #tpu.dot_dimension_numbers<[1], [0], [0], [1], [0, 0, 1, 1], [], []>, precision = #tpu.contract_precision<fp32>} : vector<16x16xf32>, vector<16x16xf32>, vector<16x16xf32> -> vector<16x16xf32>
    %cst_6 = arith.constant 2.000000e+00 : f32
    %10 = vector.broadcast %cst_6 : f32 to vector<16x16xf32>
    %11 = arith.mulf %10, %9 : vector<16x16xf32>
    %12 = arith.subf %11, %6 : vector<16x16xf32>
    %c32 = arith.constant 32 : index
    %c0_7 = arith.constant 0 : index
    %13 = vector.load %arg1[%c32, %c0_7] : memref<48x16xf32, #tpu.memory_space<vmem>>, vector<16x16xf32>
    tpu.vector_store %arg1[%c32, %c0_7], %12 {strides = array<i32>} : memref<48x16xf32, #tpu.memory_space<vmem>>, vector<16x16xf32>,
    return
  }
}

module attributes {stable_mosaic.version = 11 : i64} {
  func.func @_fused_cheby_conv_kernel(%arg0: i32, %arg1: memref<128x64xf32, #tpu.memory_space<vmem>>, %arg2: memref<128x1xf32, #tpu.memory_space<vmem>>, %arg3: memref<1x64x8xf32, #tpu.memory_space<vmem>>, %arg4: memref<1x128x8xf32, #tpu.memory_space<vmem>>) attributes {dimension_semantics = [#tpu.dimension_semantics<parallel>], iteration_bounds = array<i64: 2>, scalar_prefetch = 0 : i64, scratch_operands = 0 : i64, tpu.core_type = #tpu.core_type<tc>, window_params = [{pipeline_mode = #tpu.pipeline_mode<synchronous>, transform_indices = @transform_0, window_bounds = array<i64: 128, 64>}, {pipeline_mode = #tpu.pipeline_mode<synchronous>, transform_indices = @transform_1, window_bounds = array<i64: 128, 1>}, {transform_indices = @transform_2, window_bounds = array<i64: 1, 64, 8>}, {transform_indices = @transform_3, window_bounds = array<i64: 1, 128, 8>}]} {
    %c0 = arith.constant 0 : index
    %c0_0 = arith.constant 0 : index
    %0 = vector.load %arg1[%c0, %c0_0] : memref<128x64xf32, #tpu.memory_space<vmem>>, vector<128x64xf32>
    %c0_1 = arith.constant 0 : index
    %c0_2 = arith.constant 0 : index
    %1 = vector.load %arg2[%c0_1, %c0_2] : memref<128x1xf32, #tpu.memory_space<vmem>>, vector<128x1xf32>
    %c0_3 = arith.constant 0 : index
    %c0_4 = arith.constant 0 : index
    %c0_5 = arith.constant 0 : index
    %2 = vector.load %arg3[%c0_3, %c0_4, %c0_5] : memref<1x64x8xf32, #tpu.memory_space<vmem>>, vector<1x64x8xf32>
    %3 = vector.shape_cast %2 : vector<1x64x8xf32> to vector<64x8xf32>
    %cst = arith.constant dense<0.000000e+00> : vector<128x8xf32>
    %4 = tpu.matmul %0, %3, %cst {dimension_numbers = #tpu.dot_dimension_numbers<[1], [0], [0], [1], [0, 0, 1, 1], [], []>, precision = #tpu.contract_precision<fp32>} : vector<128x64xf32>, vector<64x8xf32>, vector<128x8xf32> -> vector<128x8xf32>
    %5 = vector.broadcast %1 : vector<128x1xf32> to vector<128x8xf32>
    %6 = arith.addf %4, %5 : vector<128x8xf32>
    %c0_6 = arith.constant 0 : index
    %c0_7 = arith.constant 0 : index
    %c0_8 = arith.constant 0 : index
    %7 = vector.load %arg4[%c0_6, %c0_7, %c0_8] : memref<1x128x8xf32, #tpu.memory_space<vmem>>, vector<1x128x8xf32>
    %8 = vector.shape_cast %7 : vector<1x128x8xf32> to vector<128x8xf32>
    %9 = vector.shape_cast %6 : vector<128x8xf32> to vector<1x128x8xf32>
    tpu.vector_store %arg4[%c0_6, %c0_7, %c0_8], %9 {strides = array<i32>} : memref<1x128x8xf32, #tpu.memory_space<vmem>>, vector<1x128x8xf32>,
    return
  }
  func.func @transform_0(%arg0: i32) -> (i32, i32) {
    %c0_i32 = arith.constant 0 : i32
    %c0_i32_0 = arith.constant 0 : i32
    %c0_i32_1 = arith.constant 0 : i32
    return %c0_i32, %c0_i32_0 : i32, i32
  }
  func.func @transform_1(%arg0: i32) -> (i32, i32) {
    %c0_i32 = arith.constant 0 : i32
    %c0_i32_0 = arith.constant 0 : i32
    %c0_i32_1 = arith.constant 0 : i32
    return %c0_i32, %c0_i32_0 : i32, i32
  }
  func.func @transform_2(%arg0: i32) -> (i32, i32, i32) {
    %c0_i32 = arith.constant 0 : i32
    %c0_i32_0 = arith.constant 0 : i32
    %c0_i32_1 = arith.constant 0 : i32
    return %arg0, %c0_i32, %c0_i32_0 : i32, i32, i32
  }
  func.func @transform_3(%arg0: i32) -> (i32, i32, i32) {
    %c0_i32 = arith.constant 0 : i32
    %c0_i32_0 = arith.constant 0 : i32
    %c0_i32_1 = arith.constant 0 : i32
    return %arg0, %c0_i32, %c0_i32_0 : i32, i32, i32
  }
}

</mosaic_0001>

<llo_original>
// kernel: cheby_conv_forward.2
$region0: #{cheby_conv_forward.2}
  #allocation0 [shape = 'u32[]', space=smem, size = 0x4, offset = 0x4, fixed_abs, tag = 'smem constant byte address 0x4 - core index']
  #allocation1 [shape = 'u32[72,128]{1,0:T(1,128)}', space=vmem, size = 0x9000, scoped, tag = 'internal scratch']
  %s0 = inlined_call_operand.hbm [shape: f32[16,16], index: 0, kind: input, shape index: {}]
  %s1 = inlined_call_operand.vmem [shape: f32[48,16], index: 1, kind: output, shape index: {}]
  %s2 = sld [smem:[#allocation0]]
  $region18: #{cheby_conv_forward.2} parent=0
    _
  %s4 = ssub.s32 1, %s2
  %s5 = scalar_select 0, %s4, %s2
  $region1: #{cheby_conv_forward.2} parent=0
    #allocation2 [shape = 'u8[8192]{0}', space=vmem, size = 0x2000, scoped, tag = 'input window, operand 0, single buffered']
    #allocation3 [shape = 's32[1]{0}', space=sflag, size = 0x4, scoped, tag = 'scoped memory for cheby_conv_forward.2']
    %6 = vsyncpa [#allocation3], 0
    // Predicated region
    $region2: #{cheby_conv_forward.2} parent=1 // pred_check
      _
    $region3: #{cheby_conv_forward.2} parent=1 // pred_check_branch
      %8 = sbr.rel (0) target = $region5
    $region4: #{cheby_conv_forward.2} parent=1 // pred_region
      %10 = vsyncadd [#allocation3], 0
      %s11 = sshll.u32 %s0, 4
      %s12 = int_to_ptr.hbm [resolvable:$true] %s11
      %s13 = sshll.u32 [#allocation2], 4
      %s14 = int_to_ptr.vmem [resolvable:$true] %s13
      %19 = dma.hbm_to_vmem [thread:$0]  %s12, 256, %s14, [#allocation3], 128, 128, 8
    $region5: #{cheby_conv_forward.2} parent=1 // pred_fallthru
      _
    // Predicated region
    $region6: #{cheby_conv_forward.2} parent=1 // pred_check
      _
    $region7: #{cheby_conv_forward.2} parent=1 // pred_check_branch
      %21 = sbr.rel (0) target = $region9
    $region8: #{cheby_conv_forward.2} parent=1 // pred_region
      %23 = dma.done [#allocation3], 256
    $region9: #{cheby_conv_forward.2} parent=1 // pred_fallthru
      _
    %v24 = vld [vmem:[#allocation2] sm:$0xff]
    %v25 = vld [vmem:[#allocation2 + $0x8] sm:$0xff]
    %v26 = vlaneseq
    %v27 = vshrl.u32 %v26, 7
    %v28 = vadd.s32 %v27, 8
    %v29 = vlaneseq
    %v30 = vand.u32 %v29, 127
    %vm31 = vcmp.eq.s32.totalorder %v27, %v30
    %vm32 = vcmp.eq.s32.totalorder %v28, %v30
    %v33 = vsel %vm31, 1.0, 0.0
    %v34 = vsel %vm32, 1.0, 0.0
    %vm35 = vcmask 130048
    %36 = vst.msk [vmem:[%s1] sm:$0xff] %vm35, %v33
    %37 = vst.msk [vmem:[%s1 + $0x8] sm:$0xff] %vm35, %v34
    %38 = vst.msk [vmem:[%s1 + $0x10] sm:$0xff] %vm35, %v24
    %39 = vst.msk [vmem:[%s1 + $0x18] sm:$0xff] %vm35, %v25
    %v41 = vsel %vm35, %v24, 0
    %v44 = vsel %vm35, %v25, 0
    %46 = vmatpush.msra.mxu0 0.0
    %47 = vmatpush.msra.mxu0 0.0
    %48 = vmatpush.msra.mxu0 0.0
    %49 = vmatpush.msra.mxu0 0.0
    %50 = vmatpush.msra.mxu0 0.0
    %51 = vmatpush.msra.mxu0 0.0
    %52 = vmatpush.msra.mxu0 0.0
    %53 = vmatpush.msra.mxu0 0.0
    %54 = vmatpush.msra.mxu0 0.0
    %55 = vmatpush.msra.mxu0 0.0
    %56 = vmatpush.msra.mxu0 0.0
    %57 = vmatpush.msra.mxu0 0.0
    %58 = vmatpush.msra.mxu0 0.0
    %59 = vmatpush.msra.mxu0 0.0
    %v60 = vand.u32 %v25, 4294901760
    %61 = vmatpush.msra.mxu0 %v60
    %v62 = vand.u32 %v24, 4294901760
    %63 = vmatpush.msra.mxu0 %v62
    %v64 = vand.u32 %v41, 4294901760
    %v65 = vsub.f32 %v41, %v64
    %v66 = vand.u32 %v65, 4294901760
    %v67 = vsub.f32 %v65, %v66
    %v68 = vand.u32 %v67, 4294901760
    %69 = vmatmul.f32.gmra.mxu0 %v68
    %v70 = vpop.f32.mrf.mxu0
    %v71 = vadd.f32 0.0, %v70
    %v72 = vand.u32 %v44, 4294901760
    %v73 = vsub.f32 %v44, %v72
    %v74 = vand.u32 %v73, 4294901760
    %v75 = vsub.f32 %v73, %v74
    %v76 = vand.u32 %v75, 4294901760
    %77 = vmatmul.f32.gmra.mxu0 %v76
    %v78 = vpop.f32.mrf.mxu0
    %v79 = vadd.f32 0.0, %v78
    %80 = vdwg.mxu0
    %81 = vmatpush.msra.mxu0 0.0
    %82 = vmatpush.msra.mxu0 0.0
    %83 = vmatpush.msra.mxu0 0.0
    %84 = vmatpush.msra.mxu0 0.0
    %85 = vmatpush.msra.mxu0 0.0
    %86 = vmatpush.msra.mxu0 0.0
    %87 = vmatpush.msra.mxu0 0.0
    %88 = vmatpush.msra.mxu0 0.0
    %89 = vmatpush.msra.mxu0 0.0
    %90 = vmatpush.msra.mxu0 0.0
    %91 = vmatpush.msra.mxu0 0.0
    %92 = vmatpush.msra.mxu0 0.0
    %93 = vmatpush.msra.mxu0 0.0
    %94 = vmatpush.msra.mxu0 0.0
    %v95 = vand.u32 %v25, 4294901760
    %v96 = vsub.f32 %v25, %v95
    %v97 = vand.u32 %v96, 4294901760
    %v98 = vsub.f32 %v96, %v97
    %v99 = vand.u32 %v98, 4294901760
    %100 = vmatpush.msra.mxu0 %v99
    %v101 = vand.u32 %v24, 4294901760
    %v102 = vsub.f32 %v24, %v101
    %v103 = vand.u32 %v102, 4294901760
    %v104 = vsub.f32 %v102, %v103
    %v105 = vand.u32 %v104, 4294901760
    %106 = vmatpush.msra.mxu0 %v105
    %v107 = vand.u32 %v41, 4294901760
    %108 = vmatmul.f32.gmra.mxu0 %v107
    %v109 = vpop.f32.mrf.mxu0
    %v110 = vadd.f32 %v71, %v109
    %v111 = vand.u32 %v44, 4294901760
    %112 = vmatmul.f32.gmra.mxu0 %v111
    %v113 = vpop.f32.mrf.mxu0
    %v114 = vadd.f32 %v79, %v113
    %115 = vdwg.mxu0
    %116 = vmatpush.msra.mxu0 0.0
    %117 = vmatpush.msra.mxu0 0.0
    %118 = vmatpush.msra.mxu0 0.0
    %119 = vmatpush.msra.mxu0 0.0
    %120 = vmatpush.msra.mxu0 0.0
    %121 = vmatpush.msra.mxu0 0.0
    %122 = vmatpush.msra.mxu0 0.0
    %123 = vmatpush.msra.mxu0 0.0
    %124 = vmatpush.msra.mxu0 0.0
    %125 = vmatpush.msra.mxu0 0.0
    %126 = vmatpush.msra.mxu0 0.0
    %127 = vmatpush.msra.mxu0 0.0
    %128 = vmatpush.msra.mxu0 0.0
    %129 = vmatpush.msra.mxu0 0.0
    %v130 = vand.u32 %v25, 4294901760
    %v131 = vsub.f32 %v25, %v130
    %132 = vmatpush.msra.mxu0 %v131
    %v133 = vand.u32 %v24, 4294901760
    %v134 = vsub.f32 %v24, %v133
    %135 = vmatpush.msra.mxu0 %v134
    %v136 = vand.u32 %v41, 4294901760
    %v137 = vsub.f32 %v41, %v136
    %138 = vmatmul.f32.gmra.mxu0 %v137
    %v139 = vpop.f32.mrf.mxu0
    %v140 = vadd.f32 %v110, %v139
    %v141 = vand.u32 %v44, 4294901760
    %v142 = vsub.f32 %v44, %v141
    %143 = vmatmul.f32.gmra.mxu0 %v142
    %v144 = vpop.f32.mrf.mxu0
    %v145 = vadd.f32 %v114, %v144
    %146 = vdwg.mxu0
    %147 = vmatpush.msra.mxu0 0.0
    %148 = vmatpush.msra.mxu0 0.0
    %149 = vmatpush.msra.mxu0 0.0
    %150 = vmatpush.msra.mxu0 0.0
    %151 = vmatpush.msra.mxu0 0.0
    %152 = vmatpush.msra.mxu0 0.0
    %153 = vmatpush.msra.mxu0 0.0
    %154 = vmatpush.msra.mxu0 0.0
    %155 = vmatpush.msra.mxu0 0.0
    %156 = vmatpush.msra.mxu0 0.0
    %157 = vmatpush.msra.mxu0 0.0
    %158 = vmatpush.msra.mxu0 0.0
    %159 = vmatpush.msra.mxu0 0.0
    %160 = vmatpush.msra.mxu0 0.0
    %v161 = vand.u32 %v25, 4294901760
    %162 = vmatpush.msra.mxu0 %v161
    %v163 = vand.u32 %v24, 4294901760
    %164 = vmatpush.msra.mxu0 %v163
    %v165 = vand.u32 %v41, 4294901760
    %v166 = vsub.f32 %v41, %v165
    %v167 = vand.u32 %v166, 4294901760
    %168 = vmatmul.f32.gmra.mxu0 %v167
    %v169 = vpop.f32.mrf.mxu0
    %v170 = vadd.f32 %v140, %v169
    %v171 = vand.u32 %v44, 4294901760
    %v172 = vsub.f32 %v44, %v171
    %v173 = vand.u32 %v172, 4294901760
    %174 = vmatmul.f32.gmra.mxu0 %v173
    %v175 = vpop.f32.mrf.mxu0
    %v176 = vadd.f32 %v145, %v175
    %177 = vdwg.mxu0
    %178 = vmatpush.msra.mxu0 0.0
    %179 = vmatpush.msra.mxu0 0.0
    %180 = vmatpush.msra.mxu0 0.0
    %181 = vmatpush.msra.mxu0 0.0
    %182 = vmatpush.msra.mxu0 0.0
    %183 = vmatpush.msra.mxu0 0.0
    %184 = vmatpush.msra.mxu0 0.0
    %185 = vmatpush.msra.mxu0 0.0
    %186 = vmatpush.msra.mxu0 0.0
    %187 = vmatpush.msra.mxu0 0.0
    %188 = vmatpush.msra.mxu0 0.0
    %189 = vmatpush.msra.mxu0 0.0
    %190 = vmatpush.msra.mxu0 0.0
    %191 = vmatpush.msra.mxu0 0.0
    %v192 = vand.u32 %v25, 4294901760
    %v193 = vsub.f32 %v25, %v192
    %v194 = vand.u32 %v193, 4294901760
    %195 = vmatpush.msra.mxu0 %v194
    %v196 = vand.u32 %v24, 4294901760
    %v197 = vsub.f32 %v24, %v196
    %v198 = vand.u32 %v197, 4294901760
    %199 = vmatpush.msra.mxu0 %v198
    %v200 = vand.u32 %v41, 4294901760
    %201 = vmatmul.f32.gmra.mxu0 %v200
    %v202 = vpop.f32.mrf.mxu0
    %v203 = vadd.f32 %v170, %v202
    %v204 = vand.u32 %v44, 4294901760
    %205 = vmatmul.f32.gmra.mxu0 %v204
    %v206 = vpop.f32.mrf.mxu0
    %v207 = vadd.f32 %v176, %v206
    %208 = vdwg.mxu0
    %209 = vmatpush.msra.mxu0 0.0
    %210 = vmatpush.msra.mxu0 0.0
    %211 = vmatpush.msra.mxu0 0.0
    %212 = vmatpush.msra.mxu0 0.0
    %213 = vmatpush.msra.mxu0 0.0
    %214 = vmatpush.msra.mxu0 0.0
    %215 = vmatpush.msra.mxu0 0.0
    %216 = vmatpush.msra.mxu0 0.0
    %217 = vmatpush.msra.mxu0 0.0
    %218 = vmatpush.msra.mxu0 0.0
    %219 = vmatpush.msra.mxu0 0.0
    %220 = vmatpush.msra.mxu0 0.0
    %221 = vmatpush.msra.mxu0 0.0
    %222 = vmatpush.msra.mxu0 0.0
    %v223 = vand.u32 %v25, 4294901760
    %224 = vmatpush.msra.mxu0 %v223
    %v225 = vand.u32 %v24, 4294901760
    %226 = vmatpush.msra.mxu0 %v225
    %v227 = vand.u32 %v41, 4294901760
    %228 = vmatmul.f32.gmra.mxu0 %v227
    %v229 = vpop.f32.mrf.mxu0
    %v230 = vadd.f32 %v203, %v229
    %v231 = vand.u32 %v44, 4294901760
    %232 = vmatmul.f32.gmra.mxu0 %v231
    %v233 = vpop.f32.mrf.mxu0
    %v234 = vadd.f32 %v207, %v233
    %235 = vdwg.mxu0
    %v236 = vmul.f32 %v230, 2.0
    %v237 = vmul.f32 %v234, 2.0
    %v238 = vsub.f32 %v236, %v33
    %v239 = vsub.f32 %v237, %v34
    %240 = vst.msk [vmem:[%s1 + $0x20] sm:$0xff] %vm35, %v238
    %241 = vst.msk [vmem:[%s1 + $0x28] sm:$0xff] %vm35, %v239
    // Predicated region
    $region10: #{cheby_conv_forward.2} parent=1 // pred_check
      _
    $region11: #{cheby_conv_forward.2} parent=1 // pred_check_branch
      %243 = sbr.rel (0) target = $region13
    $region12: #{cheby_conv_forward.2} parent=1 // pred_region
      _
    $region13: #{cheby_conv_forward.2} parent=1 // pred_fallthru
      _
    // Predicated region
    $region14: #{cheby_conv_forward.2} parent=1 // pred_check
      _
    $region15: #{cheby_conv_forward.2} parent=1 // pred_check_branch
      %245 = sbr.rel (0) target = $region17
    $region16: #{cheby_conv_forward.2} parent=1 // pred_region
      _
    $region17: #{cheby_conv_forward.2} parent=1 // pred_fallthru
      _
    %246 = vsyncpa [#allocation3], 1

// kernel: cheby_conv_forward.3
$region0: #{cheby_conv_forward.3}
  #allocation0 [shape = 'u32[]', space=smem, size = 0x4, offset = 0x4, fixed_abs, tag = 'smem constant byte address 0x4 - core index']
  #allocation1 [shape = 'u32[72,128]{1,0:T(1,128)}', space=vmem, size = 0x9000, scoped, tag = 'internal scratch']
  %s0 = inlined_call_operand.vmem [shape: f32[128,64], index: 0, kind: input, shape index: {}]
  %s1 = inlined_call_operand.vmem [shape: f32[128,1], index: 1, kind: input, shape index: {}]
  %s2 = inlined_call_operand.vmem [shape: f32[2,64,8], index: 2, kind: input, shape index: {}]
  %s3 = inlined_call_operand.vmem [shape: f32[2,128,8], index: 3, kind: output, shape index: {}]
  %s4 = sld [smem:[#allocation0]]
  $region45: #{cheby_conv_forward.3} parent=0
    _
  %s6 = ssub.s32 1, %s4
  %s7 = scalar_select 0, %s6, %s4
  loop: start=0, step=1, limit=4
  $region2: #{cheby_conv_forward.3} parent=0 // loop_pre_header
    _
  $region3: #{cheby_conv_forward.3} parent=0 // loop_header
    %s9 = sphi 0, %s13
    %p10 = scmp.ge.s32.totalorder %s9, 4
    %s17 = sphi 0, %s17
    %s19 = sphi 0, %s17
    %s20 = sphi 0, %s19
    %s34 = sphi 0, %s20
    %s38 = sphi 0, %s38
    %s40 = sphi 0, %s38
    %s41 = sphi 0, %s40
    %s55 = sphi 0, %s41
    %s61 = sphi 0, %s63
    %s64 = sphi 0, %s61
    %s65 = sphi 0, %s64
    %s81 = sphi 0, %s65
    %s87 = sphi 0, %s89
    %s90 = sphi 0, %s87
    %s91 = sphi 0, %s90
    %s107 = sphi 0, %s91
  $region4: #{cheby_conv_forward.3} parent=0 // loop_header_branch
    %12 = sbr.rel (%p10) target = $region8
  $region5: #{cheby_conv_forward.3} parent=0 // loop_body
    %s14 = ssub.s32 %s9, 1
    %s15 = ssub.s32 %s9, 2
    %s16 = sadd.s32 %s9, 1
    %s18 = sadd.s32 %s17, 1
    %p21 = scmp.eq.s32.totalorder %s9, 1
    %p22 = scmp.ne.s32.totalorder %s17, %s19
    %p23 = scmp.eq.s32.totalorder %s9, 0
    %p24 = por %p22, %p23
    %p25 = scmp.ne.s32.totalorder %s17, %s19
    %p26 = scmp.eq.s32.totalorder %s14, 1
    %p27 = por %p25, %p26
    %p28 = scmp.ne.s32.totalorder %s19, %s20
    %p29 = scmp.eq.s32.totalorder %s14, 0
    %p30 = por %p28, %p29
    %p31 = scmp.ne.s32.totalorder %s19, %s20
    %p32 = scmp.eq.s32.totalorder %s15, 1
    %p33 = por %p31, %p32
    %p35 = scmp.ne.s32.totalorder %s20, %s34
    %p36 = scmp.eq.s32.totalorder %s15, 0
    %p37 = por %p35, %p36
    %s39 = sadd.s32 %s38, 1
    %p42 = scmp.eq.s32.totalorder %s9, 1
    %p43 = scmp.ne.s32.totalorder %s38, %s40
    %p44 = scmp.eq.s32.totalorder %s9, 0
    %p45 = por %p43, %p44
    %p46 = scmp.ne.s32.totalorder %s38, %s40
    %p47 = scmp.eq.s32.totalorder %s14, 1
    %p48 = por %p46, %p47
    %p49 = scmp.ne.s32.totalorder %s40, %s41
    %p50 = scmp.eq.s32.totalorder %s14, 0
    %p51 = por %p49, %p50
    %p52 = scmp.ne.s32.totalorder %s40, %s41
    %p53 = scmp.eq.s32.totalorder %s15, 1
    %p54 = por %p52, %p53
    %p56 = scmp.ne.s32.totalorder %s41, %s55
    %p57 = scmp.eq.s32.totalorder %s15, 0
    %p58 = por %p56, %p57
    %s59 = ssub.s32 %s9, %s16
    %p60 = scmp.eq.s32.totalorder %s59, 0
    %s62 = sadd.s32 %s61, 1
    %s63 = scalar_select %p60, %s61, %s62
    %p66 = pneg %p60
    %p67 = scmp.eq.s32.totalorder %s9, 1
    %p68 = por %p66, %p67
    %p69 = scmp.ne.s32.totalorder %s61, %s64
    %p70 = scmp.eq.s32.totalorder %s9, 0
    %p71 = por %p69, %p70
    %p72 = scmp.ne.s32.totalorder %s61, %s64
    %p73 = scmp.eq.s32.totalorder %s14, 1
    %p74 = por %p72, %p73
    %p75 = scmp.ne.s32.totalorder %s64, %s65
    %p76 = scmp.eq.s32.totalorder %s14, 0
    %p77 = por %p75, %p76
    %p78 = scmp.ne.s32.totalorder %s64, %s65
    %p79 = scmp.eq.s32.totalorder %s15, 1
    %p80 = por %p78, %p79
    %p82 = scmp.ne.s32.totalorder %s65, %s81
    %p83 = scmp.eq.s32.totalorder %s15, 0
    %p84 = por %p82, %p83
    %s85 = ssub.s32 %s9, %s16
    %p86 = scmp.eq.s32.totalorder %s85, 0
    %s88 = sadd.s32 %s87, 1
    %s89 = scalar_select %p86, %s87, %s88
    %p92 = pneg %p86
    %p93 = scmp.eq.s32.totalorder %s9, 1
    %p94 = por %p92, %p93
    %p95 = scmp.ne.s32.totalorder %s87, %s90
    %p96 = scmp.eq.s32.totalorder %s9, 0
    %p97 = por %p95, %p96
    %p98 = scmp.ne.s32.totalorder %s87, %s90
    %p99 = scmp.eq.s32.totalorder %s14, 1
    %p100 = por %p98, %p99
    %p101 = scmp.ne.s32.totalorder %s90, %s91
    %p102 = scmp.eq.s32.totalorder %s14, 0
    %p103 = por %p101, %p102
    %p104 = scmp.ne.s32.totalorder %s90, %s91
    %p105 = scmp.eq.s32.totalorder %s15, 1
    %p106 = por %p104, %p105
    %p108 = scmp.ne.s32.totalorder %s91, %s107
    %p109 = scmp.eq.s32.totalorder %s15, 0
    %p110 = por %p108, %p109
    %p111 = scmp.le.s32.totalorder 1, %s9
    %p112 = scmp.lt.s32.totalorder %s9, 3
    %p113 = pnand %p111, %p112
    %p114 = pneg %p113
    // Predicated region
    $region9: #{cheby_conv_forward.3} parent=5 // pred_check
      _
    $region10: #{cheby_conv_forward.3} parent=5 // pred_check_branch
      %116 = sbr.rel (%p113) target = $region12
    $region11: #{cheby_conv_forward.3} parent=5 // pred_region
      %s117 = ssub.s32 %s9, 1
      // Predicated region
      $region13: #{cheby_conv_forward.3} parent=11 // pred_check
        %p118 = pneg %p30
      $region14: #{cheby_conv_forward.3} parent=11 // pred_check_branch
        %120 = sbr.rel (%p118) target = $region16
      $region15: #{cheby_conv_forward.3} parent=11 // pred_region
        _
      $region16: #{cheby_conv_forward.3} parent=11 // pred_fallthru
        _
      // Predicated region
      $region17: #{cheby_conv_forward.3} parent=11 // pred_check
        %p121 = pneg %p51
      $region18: #{cheby_conv_forward.3} parent=11 // pred_check_branch
        %123 = sbr.rel (%p121) target = $region20
      $region19: #{cheby_conv_forward.3} parent=11 // pred_region
        _
      $region20: #{cheby_conv_forward.3} parent=11 // pred_fallthru
        _
    $region12: #{cheby_conv_forward.3} parent=5 // pred_fallthru
      _
    %p124 = scmp.lt.s32.totalorder %s9, 2
    // Predicated region
    $region21: #{cheby_conv_forward.3} parent=5 // pred_check
      %p125 = pneg %p124
    $region22: #{cheby_conv_forward.3} parent=5 // pred_check_branch
      %127 = sbr.rel (%p125) target = $region24
    $region23: #{cheby_conv_forward.3} parent=5 // pred_region
      // Predicated region
      $region25: #{cheby_conv_forward.3} parent=23 // pred_check
        %p128 = pneg %p71
      $region26: #{cheby_conv_forward.3} parent=23 // pred_check_branch
        %130 = sbr.rel (%p128) target = $region28
      $region27: #{cheby_conv_forward.3} parent=23 // pred_region
        %p131 = scmp.lt.s32.totalorder %s9, 1
        %s132 = scalar_select %p131, %s9, 1
        %s133 = smul.addr %s132, 8
        %s134 = smul.addr %s133, 8
        %s135 = scalar_lea.vmem %s2, %s134
      $region28: #{cheby_conv_forward.3} parent=23 // pred_fallthru
        _
    $region24: #{cheby_conv_forward.3} parent=5 // pred_fallthru
      _
    %p136 = scmp.le.s32.totalorder 1, %s9
    %p137 = scmp.lt.s32.totalorder %s9, 3
    %p138 = pnand %p136, %p137
    %p139 = pneg %p138
    // Predicated region
    $region29: #{cheby_conv_forward.3} parent=5 // pred_check
      _
    $region30: #{cheby_conv_forward.3} parent=5 // pred_check_branch
      %141 = sbr.rel (%p138) target = $region32
    $region31: #{cheby_conv_forward.3} parent=5 // pred_region
      %s142 = ssub.s32 %s9, 1
      %p143 = pneg %p30
      %p144 = pneg %p27
      %p145 = pneg %p51
      %p146 = pneg %p48
      %p147 = scmp.lt.s32.totalorder %s14, 1
      %s148 = scalar_select %p147, %s14, 1
      %s149 = smul.addr %s148, 8
      %s150 = smul.addr %s149, 8
      %s151 = scalar_lea.vmem %s2, %s150
      %p152 = pneg %p77
      %p153 = pneg %p74
      %p154 = pneg %p103
      %p155 = pneg %p100
      %p156 = scmp.lt.s32.totalorder %s14, 1
      %s157 = scalar_select %p156, %s14, 1
      %s158 = smul.addr %s157, 16
      %s159 = smul.addr %s158, 8
      %s160 = scalar_lea.vmem %s3, %s159
      %p161 = scmp.lt.s32.totalorder %s14, 1
      %s162 = scalar_select %p161, %s14, 1
      %s163 = smul.addr %s162, 8
      %s164 = smul.addr %s163, 8
      %s165 = scalar_lea.vmem %s2, %s164
      %p166 = scmp.lt.s32.totalorder %s14, 1
      %s167 = scalar_select %p166, %s14, 1
      %s168 = smul.addr %s167, 16
      %s169 = smul.addr %s168, 8
      %s170 = scalar_lea.vmem %s3, %s169
      %v171 = vld [vmem:[%s0] sm:$0xff]
      %v172 = vld [vmem:[%s0 + $0x8] sm:$0xff]
      %v173 = vld [vmem:[%s0 + $0x10] sm:$0xff]
      %v174 = vld [vmem:[%s0 + $0x18] sm:$0xff]
      %v175 = vld [vmem:[%s0 + $0x20] sm:$0xff]
      %v176 = vld [vmem:[%s0 + $0x28] sm:$0xff]
      %v177 = vld [vmem:[%s0 + $0x30] sm:$0xff]
      %v178 = vld [vmem:[%s0 + $0x38] sm:$0xff]
      %v179 = vld [vmem:[%s0 + $0x40] sm:$0xff]
      %v180 = vld [vmem:[%s0 + $0x48] sm:$0xff]
      %v181 = vld [vmem:[%s0 + $0x50] sm:$0xff]
      %v182 = vld [vmem:[%s0 + $0x58] sm:$0xff]
      %v183 = vld [vmem:[%s0 + $0x60] sm:$0xff]
      %v184 = vld [vmem:[%s0 + $0x68] sm:$0xff]
      %v185 = vld [vmem:[%s0 + $0x70] sm:$0xff]
      %v186 = vld [vmem:[%s0 + $0x78] sm:$0xff]
      %v187 = vld [vmem:[%s1] sm:$0xff]
      %v188 = vld [vmem:[%s1 + $0x8] sm:$0xff]
      %v189 = vld [vmem:[%s1 + $0x10] sm:$0xff]
      %v190 = vld [vmem:[%s1 + $0x18] sm:$0xff]
      %v191 = vld [vmem:[%s1 + $0x20] sm:$0xff]
      %v192 = vld [vmem:[%s1 + $0x28] sm:$0xff]
      %v193 = vld [vmem:[%s1 + $0x30] sm:$0xff]
      %v194 = vld [vmem:[%s1 + $0x38] sm:$0xff]
      %v195 = vld [vmem:[%s1 + $0x40] sm:$0xff]
      %v196 = vld [vmem:[%s1 + $0x48] sm:$0xff]
      %v197 = vld [vmem:[%s1 + $0x50] sm:$0xff]
      %v198 = vld [vmem:[%s1 + $0x58] sm:$0xff]
      %v199 = vld [vmem:[%s1 + $0x60] sm:$0xff]
      %v200 = vld [vmem:[%s1 + $0x68] sm:$0xff]
      %v201 = vld [vmem:[%s1 + $0x70] sm:$0xff]
      %v202 = vld [vmem:[%s1 + $0x78] sm:$0xff]
      %v203 = vld [vmem:[%s165] sm:$0xff]
      %v204 = vld [vmem:[%s165 + $0x8] sm:$0xff]
      %v205 = vld [vmem:[%s165 + $0x10] sm:$0xff]
      %v206 = vld [vmem:[%s165 + $0x18] sm:$0xff]
      %v207 = vld [vmem:[%s165 + $0x20] sm:$0xff]
      %v208 = vld [vmem:[%s165 + $0x28] sm:$0xff]
      %v209 = vld [vmem:[%s165 + $0x30] sm:$0xff]
      %v210 = vld [vmem:[%s165 + $0x38] sm:$0xff]
      %212 = vset.pattern.permute.xlu0 0
      %213 = vperm.xlu0 %212, %v187
      %v214 = vpop.permute.xlu0 %213
      %217 = vset.pattern.permute.xlu0 0
      %218 = vperm.xlu0 %217, %v188
      %v219 = vpop.permute.xlu0 %218
      %222 = vset.pattern.permute.xlu0 0
      %223 = vperm.xlu0 %222, %v189
      %v224 = vpop.permute.xlu0 %223
      %227 = vset.pattern.permute.xlu0 0
      %228 = vperm.xlu0 %227, %v190
      %v229 = vpop.permute.xlu0 %228
      %232 = vset.pattern.permute.xlu0 0
      %233 = vperm.xlu0 %232, %v191
      %v234 = vpop.permute.xlu0 %233
      %237 = vset.pattern.permute.xlu0 0
      %238 = vperm.xlu0 %237, %v192
      %v239 = vpop.permute.xlu0 %238
      %242 = vset.pattern.permute.xlu0 0
      %243 = vperm.xlu0 %242, %v193
      %v244 = vpop.permute.xlu0 %243
      %247 = vset.pattern.permute.xlu0 0
      %248 = vperm.xlu0 %247, %v194
      %v249 = vpop.permute.xlu0 %248
      %252 = vset.pattern.permute.xlu0 0
      %253 = vperm.xlu0 %252, %v195
      %v254 = vpop.permute.xlu0 %253
      %257 = vset.pattern.permute.xlu0 0
      %258 = vperm.xlu0 %257, %v196
      %v259 = vpop.permute.xlu0 %258
      %262 = vset.pattern.permute.xlu0 0
      %263 = vperm.xlu0 %262, %v197
      %v264 = vpop.permute.xlu0 %263
      %267 = vset.pattern.permute.xlu0 0
      %268 = vperm.xlu0 %267, %v198
      %v269 = vpop.permute.xlu0 %268
      %272 = vset.pattern.permute.xlu0 0
      %273 = vperm.xlu0 %272, %v199
      %v274 = vpop.permute.xlu0 %273
      %277 = vset.pattern.permute.xlu0 0
      %278 = vperm.xlu0 %277, %v200
      %v279 = vpop.permute.xlu0 %278
      %282 = vset.pattern.permute.xlu0 0
      %283 = vperm.xlu0 %282, %v201
      %v284 = vpop.permute.xlu0 %283
      %287 = vset.pattern.permute.xlu0 0
      %288 = vperm.xlu0 %287, %v202
      %v289 = vpop.permute.xlu0 %288
      %vm291 = vcmask 523264
      %v293 = vsel %vm291, %v171, 0
      %v296 = vsel %vm291, %v172, 0
      %v299 = vsel %vm291, %v173, 0
      %v302 = vsel %vm291, %v174, 0
      %v305 = vsel %vm291, %v175, 0
      %v308 = vsel %vm291, %v176, 0
      %v311 = vsel %vm291, %v177, 0
      %v314 = vsel %vm291, %v178, 0
      %v317 = vsel %vm291, %v179, 0
      %v320 = vsel %vm291, %v180, 0
      %v323 = vsel %vm291, %v181, 0
      %v326 = vsel %vm291, %v182, 0
      %v329 = vsel %vm291, %v183, 0
      %v332 = vsel %vm291, %v184, 0
      %v335 = vsel %vm291, %v185, 0
      %v338 = vsel %vm291, %v186, 0
      %340 = vmatpush.msra.mxu0 0.0
      %341 = vmatpush.msra.mxu0 0.0
      %342 = vmatpush.msra.mxu0 0.0
      %343 = vmatpush.msra.mxu0 0.0
      %344 = vmatpush.msra.mxu0 0.0
      %345 = vmatpush.msra.mxu0 0.0
      %346 = vmatpush.msra.mxu0 0.0
      %347 = vmatpush.msra.mxu0 0.0
      %v348 = vand.u32 %v210, 4294901760
      %349 = vmatpush.msra.mxu0 %v348
      %v350 = vand.u32 %v209, 4294901760
      %351 = vmatpush.msra.mxu0 %v350
      %v352 = vand.u32 %v208, 4294901760
      %353 = vmatpush.msra.mxu0 %v352
      %v354 = vand.u32 %v207, 4294901760
      %355 = vmatpush.msra.mxu0 %v354
      %v356 = vand.u32 %v206, 4294901760
      %357 = vmatpush.msra.mxu0 %v356
      %v358 = vand.u32 %v205, 4294901760
      %359 = vmatpush.msra.mxu0 %v358
      %v360 = vand.u32 %v204, 4294901760
      %361 = vmatpush.msra.mxu0 %v360
      %v362 = vand.u32 %v203, 4294901760
      %363 = vmatpush.msra.mxu0 %v362
      %v364 = vand.u32 %v293, 4294901760
      %v365 = vsub.f32 %v293, %v364
      %v366 = vand.u32 %v365, 4294901760
      %v367 = vsub.f32 %v365, %v366
      %v368 = vand.u32 %v367, 4294901760
      %369 = vmatmul.f32.gmra.mxu0 %v368
      %v370 = vpop.f32.mrf.mxu0
      %v371 = vadd.f32 %v214, %v370
      %v372 = vand.u32 %v296, 4294901760
      %v373 = vsub.f32 %v296, %v372
      %v374 = vand.u32 %v373, 4294901760
      %v375 = vsub.f32 %v373, %v374
      %v376 = vand.u32 %v375, 4294901760
      %377 = vmatmul.f32.gmra.mxu0 %v376
      %v378 = vpop.f32.mrf.mxu0
      %v379 = vadd.f32 %v219, %v378
      %v380 = vand.u32 %v299, 4294901760
      %v381 = vsub.f32 %v299, %v380
      %v382 = vand.u32 %v381, 4294901760
      %v383 = vsub.f32 %v381, %v382
      %v384 = vand.u32 %v383, 4294901760
      %385 = vmatmul.f32.gmra.mxu0 %v384
      %v386 = vpop.f32.mrf.mxu0
      %v387 = vadd.f32 %v224, %v386
      %v388 = vand.u32 %v302, 4294901760
      %v389 = vsub.f32 %v302, %v388
      %v390 = vand.u32 %v389, 4294901760
      %v391 = vsub.f32 %v389, %v390
      %v392 = vand.u32 %v391, 4294901760
      %393 = vmatmul.f32.gmra.mxu0 %v392
      %v394 = vpop.f32.mrf.mxu0
      %v395 = vadd.f32 %v229, %v394
      %v396 = vand.u32 %v305, 4294901760
      %v397 = vsub.f32 %v305, %v396
      %v398 = vand.u32 %v397, 4294901760
      %v399 = vsub.f32 %v397, %v398
      %v400 = vand.u32 %v399, 4294901760
      %401 = vmatmul.f32.gmra.mxu0 %v400
      %v402 = vpop.f32.mrf.mxu0
      %v403 = vadd.f32 %v234, %v402
      %v404 = vand.u32 %v308, 4294901760
      %v405 = vsub.f32 %v308, %v404
      %v406 = vand.u32 %v405, 4294901760
      %v407 = vsub.f32 %v405, %v406
      %v408 = vand.u32 %v407, 4294901760
      %409 = vmatmul.f32.gmra.mxu0 %v408
      %v410 = vpop.f32.mrf.mxu0
      %v411 = vadd.f32 %v239, %v410
      %v412 = vand.u32 %v311, 4294901760
      %v413 = vsub.f32 %v311, %v412
      %v414 = vand.u32 %v413, 4294901760
      %v415 = vsub.f32 %v413, %v414
      %v416 = vand.u32 %v415, 4294901760
      %417 = vmatmul.f32.gmra.mxu0 %v416
      %v418 = vpop.f32.mrf.mxu0
      %v419 = vadd.f32 %v244, %v418
      %v420 = vand.u32 %v314, 4294901760
      %v421 = vsub.f32 %v314, %v420
      %v422 = vand.u32 %v421, 4294901760
      %v423 = vsub.f32 %v421, %v422
      %v424 = vand.u32 %v423, 4294901760
      %425 = vmatmul.f32.gmra.mxu0 %v424
      %v426 = vpop.f32.mrf.mxu0
      %v427 = vadd.f32 %v249, %v426
      %v428 = vand.u32 %v317, 4294901760
      %v429 = vsub.f32 %v317, %v428
      %v430 = vand.u32 %v429, 4294901760
      %v431 = vsub.f32 %v429, %v430
      %v432 = vand.u32 %v431, 4294901760
      %433 = vmatmul.f32.gmra.mxu0 %v432
      %v434 = vpop.f32.mrf.mxu0
      %v435 = vadd.f32 %v254, %v434
      %v436 = vand.u32 %v320, 4294901760
      %v437 = vsub.f32 %v320, %v436
      %v438 = vand.u32 %v437, 4294901760
      %v439 = vsub.f32 %v437, %v438
      %v440 = vand.u32 %v439, 4294901760
      %441 = vmatmul.f32.gmra.mxu0 %v440
      %v442 = vpop.f32.mrf.mxu0
      %v443 = vadd.f32 %v259, %v442
      %v444 = vand.u32 %v323, 4294901760
      %v445 = vsub.f32 %v323, %v444
      %v446 = vand.u32 %v445, 4294901760
      %v447 = vsub.f32 %v445, %v446
      %v448 = vand.u32 %v447, 4294901760
      %449 = vmatmul.f32.gmra.mxu0 %v448
      %v450 = vpop.f32.mrf.mxu0
      %v451 = vadd.f32 %v264, %v450
      %v452 = vand.u32 %v326, 4294901760
      %v453 = vsub.f32 %v326, %v452
      %v454 = vand.u32 %v453, 4294901760
      %v455 = vsub.f32 %v453, %v454
      %v456 = vand.u32 %v455, 4294901760
      %457 = vmatmul.f32.gmra.mxu0 %v456
      %v458 = vpop.f32.mrf.mxu0
      %v459 = vadd.f32 %v269, %v458
      %v460 = vand.u32 %v329, 4294901760
      %v461 = vsub.f32 %v329, %v460
      %v462 = vand.u32 %v461, 4294901760
      %v463 = vsub.f32 %v461, %v462
      %v464 = vand.u32 %v463, 4294901760
      %465 = vmatmul.f32.gmra.mxu0 %v464
      %v466 = vpop.f32.mrf.mxu0
      %v467 = vadd.f32 %v274, %v466
      %v468 = vand.u32 %v332, 4294901760
      %v469 = vsub.f32 %v332, %v468
      %v470 = vand.u32 %v469, 4294901760
      %v471 = vsub.f32 %v469, %v470
      %v472 = vand.u32 %v471, 4294901760
      %473 = vmatmul.f32.gmra.mxu0 %v472
      %v474 = vpop.f32.mrf.mxu0
      %v475 = vadd.f32 %v279, %v474
      %v476 = vand.u32 %v335, 4294901760
      %v477 = vsub.f32 %v335, %v476
      %v478 = vand.u32 %v477, 4294901760
      %v479 = vsub.f32 %v477, %v478
      %v480 = vand.u32 %v479, 4294901760
      %481 = vmatmul.f32.gmra.mxu0 %v480
      %v482 = vpop.f32.mrf.mxu0
      %v483 = vadd.f32 %v284, %v482
      %v484 = vand.u32 %v338, 4294901760
      %v485 = vsub.f32 %v338, %v484
      %v486 = vand.u32 %v485, 4294901760
      %v487 = vsub.f32 %v485, %v486
      %v488 = vand.u32 %v487, 4294901760
      %489 = vmatmul.f32.gmra.mxu0 %v488
      %v490 = vpop.f32.mrf.mxu0
      %v491 = vadd.f32 %v289, %v490
      %492 = vdwg.mxu0
      %493 = vmatpush.msra.mxu0 0.0
      %494 = vmatpush.msra.mxu0 0.0
      %495 = vmatpush.msra.mxu0 0.0
      %496 = vmatpush.msra.mxu0 0.0
      %497 = vmatpush.msra.mxu0 0.0
      %498 = vmatpush.msra.mxu0 0.0
      %499 = vmatpush.msra.mxu0 0.0
      %500 = vmatpush.msra.mxu0 0.0
      %v501 = vand.u32 %v210, 4294901760
      %v502 = vsub.f32 %v210, %v501
      %v503 = vand.u32 %v502, 4294901760
      %v504 = vsub.f32 %v502, %v503
      %v505 = vand.u32 %v504, 4294901760
      %506 = vmatpush.msra.mxu0 %v505
      %v507 = vand.u32 %v209, 4294901760
      %v508 = vsub.f32 %v209, %v507
      %v509 = vand.u32 %v508, 4294901760
      %v510 = vsub.f32 %v508, %v509
      %v511 = vand.u32 %v510, 4294901760
      %512 = vmatpush.msra.mxu0 %v511
      %v513 = vand.u32 %v208, 4294901760
      %v514 = vsub.f32 %v208, %v513
      %v515 = vand.u32 %v514, 4294901760
      %v516 = vsub.f32 %v514, %v515
      %v517 = vand.u32 %v516, 4294901760
      %518 = vmatpush.msra.mxu0 %v517
      %v519 = vand.u32 %v207, 4294901760
      %v520 = vsub.f32 %v207, %v519
      %v521 = vand.u32 %v520, 4294901760
      %v522 = vsub.f32 %v520, %v521
      %v523 = vand.u32 %v522, 4294901760
      %524 = vmatpush.msra.mxu0 %v523
      %v525 = vand.u32 %v206, 4294901760
      %v526 = vsub.f32 %v206, %v525
      %v527 = vand.u32 %v526, 4294901760
      %v528 = vsub.f32 %v526, %v527
      %v529 = vand.u32 %v528, 4294901760
      %530 = vmatpush.msra.mxu0 %v529
      %v531 = vand.u32 %v205, 4294901760
      %v532 = vsub.f32 %v205, %v531
      %v533 = vand.u32 %v532, 4294901760
      %v534 = vsub.f32 %v532, %v533
      %v535 = vand.u32 %v534, 4294901760
      %536 = vmatpush.msra.mxu0 %v535
      %v537 = vand.u32 %v204, 4294901760
      %v538 = vsub.f32 %v204, %v537
      %v539 = vand.u32 %v538, 4294901760
      %v540 = vsub.f32 %v538, %v539
      %v541 = vand.u32 %v540, 4294901760
      %542 = vmatpush.msra.mxu0 %v541
      %v543 = vand.u32 %v203, 4294901760
      %v544 = vsub.f32 %v203, %v543
      %v545 = vand.u32 %v544, 4294901760
      %v546 = vsub.f32 %v544, %v545
      %v547 = vand.u32 %v546, 4294901760
      %548 = vmatpush.msra.mxu0 %v547
      %v549 = vand.u32 %v293, 4294901760
      %550 = vmatmul.f32.gmra.mxu0 %v549
      %v551 = vpop.f32.mrf.mxu0
      %v552 = vadd.f32 %v371, %v551
      %v553 = vand.u32 %v296, 4294901760
      %554 = vmatmul.f32.gmra.mxu0 %v553
      %v555 = vpop.f32.mrf.mxu0
      %v556 = vadd.f32 %v379, %v555
      %v557 = vand.u32 %v299, 4294901760
      %558 = vmatmul.f32.gmra.mxu0 %v557
      %v559 = vpop.f32.mrf.mxu0
      %v560 = vadd.f32 %v387, %v559
      %v561 = vand.u32 %v302, 4294901760
      %562 = vmatmul.f32.gmra.mxu0 %v561
      %v563 = vpop.f32.mrf.mxu0
      %v564 = vadd.f32 %v395, %v563
      %v565 = vand.u32 %v305, 4294901760
      %566 = vmatmul.f32.gmra.mxu0 %v565
      %v567 = vpop.f32.mrf.mxu0
      %v568 = vadd.f32 %v403, %v567
      %v569 = vand.u32 %v308, 4294901760
      %570 = vmatmul.f32.gmra.mxu0 %v569
      %v571 = vpop.f32.mrf.mxu0
      %v572 = vadd.f32 %v411, %v571
      %v573 = vand.u32 %v311, 4294901760
      %574 = vmatmul.f32.gmra.mxu0 %v573
      %v575 = vpop.f32.mrf.mxu0
      %v576 = vadd.f32 %v419, %v575
      %v577 = vand.u32 %v314, 4294901760
      %578 = vmatmul.f32.gmra.mxu0 %v577
      %v579 = vpop.f32.mrf.mxu0
      %v580 = vadd.f32 %v427, %v579
      %v581 = vand.u32 %v317, 4294901760
      %582 = vmatmul.f32.gmra.mxu0 %v581
      %v583 = vpop.f32.mrf.mxu0
      %v584 = vadd.f32 %v435, %v583
      %v585 = vand.u32 %v320, 4294901760
      %586 = vmatmul.f32.gmra.mxu0 %v585
      %v587 = vpop.f32.mrf.mxu0
      %v588 = vadd.f32 %v443, %v587
      %v589 = vand.u32 %v323, 4294901760
      %590 = vmatmul.f32.gmra.mxu0 %v589
      %v591 = vpop.f32.mrf.mxu0
      %v592 = vadd.f32 %v451, %v591
      %v593 = vand.u32 %v326, 4294901760
      %594 = vmatmul.f32.gmra.mxu0 %v593
      %v595 = vpop.f32.mrf.mxu0
      %v596 = vadd.f32 %v459, %v595
      %v597 = vand.u32 %v329, 4294901760
      %598 = vmatmul.f32.gmra.mxu0 %v597
      %v599 = vpop.f32.mrf.mxu0
      %v600 = vadd.f32 %v467, %v599
      %v601 = vand.u32 %v332, 4294901760
      %602 = vmatmul.f32.gmra.mxu0 %v601
      %v603 = vpop.f32.mrf.mxu0
      %v604 = vadd.f32 %v475, %v603
      %v605 = vand.u32 %v335, 4294901760
      %606 = vmatmul.f32.gmra.mxu0 %v605
      %v607 = vpop.f32.mrf.mxu0
      %v608 = vadd.f32 %v483, %v607
      %v609 = vand.u32 %v338, 4294901760
      %610 = vmatmul.f32.gmra.mxu0 %v609
      %v611 = vpop.f32.mrf.mxu0
      %v612 = vadd.f32 %v491, %v611
      %613 = vdwg.mxu0
      %614 = vmatpush.msra.mxu0 0.0
      %615 = vmatpush.msra.mxu0 0.0
      %616 = vmatpush.msra.mxu0 0.0
      %617 = vmatpush.msra.mxu0 0.0
      %618 = vmatpush.msra.mxu0 0.0
      %619 = vmatpush.msra.mxu0 0.0
      %620 = vmatpush.msra.mxu0 0.0
      %621 = vmatpush.msra.mxu0 0.0
      %v622 = vand.u32 %v210, 4294901760
      %v623 = vsub.f32 %v210, %v622
      %624 = vmatpush.msra.mxu0 %v623
      %v625 = vand.u32 %v209, 4294901760
      %v626 = vsub.f32 %v209, %v625
      %627 = vmatpush.msra.mxu0 %v626
      %v628 = vand.u32 %v208, 4294901760
      %v629 = vsub.f32 %v208, %v628
      %630 = vmatpush.msra.mxu0 %v629
      %v631 = vand.u32 %v207, 4294901760
      %v632 = vsub.f32 %v207, %v631
      %633 = vmatpush.msra.mxu0 %v632
      %v634 = vand.u32 %v206, 4294901760
      %v635 = vsub.f32 %v206, %v634
      %636 = vmatpush.msra.mxu0 %v635
      %v637 = vand.u32 %v205, 4294901760
      %v638 = vsub.f32 %v205, %v637
      %639 = vmatpush.msra.mxu0 %v638
      %v640 = vand.u32 %v204, 4294901760
      %v641 = vsub.f32 %v204, %v640
      %642 = vmatpush.msra.mxu0 %v641
      %v643 = vand.u32 %v203, 4294901760
      %v644 = vsub.f32 %v203, %v643
      %645 = vmatpush.msra.mxu0 %v644
      %v646 = vand.u32 %v293, 4294901760
      %v647 = vsub.f32 %v293, %v646
      %648 = vmatmul.f32.gmra.mxu0 %v647
      %v649 = vpop.f32.mrf.mxu0
      %v650 = vadd.f32 %v552, %v649
      %v651 = vand.u32 %v296, 4294901760
      %v652 = vsub.f32 %v296, %v651
      %653 = vmatmul.f32.gmra.mxu0 %v652
      %v654 = vpop.f32.mrf.mxu0
      %v655 = vadd.f32 %v556, %v654
      %v656 = vand.u32 %v299, 4294901760
      %v657 = vsub.f32 %v299, %v656
      %658 = vmatmul.f32.gmra.mxu0 %v657
      %v659 = vpop.f32.mrf.mxu0
      %v660 = vadd.f32 %v560, %v659
      %v661 = vand.u32 %v302, 4294901760
      %v662 = vsub.f32 %v302, %v661
      %663 = vmatmul.f32.gmra.mxu0 %v662
      %v664 = vpop.f32.mrf.mxu0
      %v665 = vadd.f32 %v564, %v664
      %v666 = vand.u32 %v305, 4294901760
      %v667 = vsub.f32 %v305, %v666
      %668 = vmatmul.f32.gmra.mxu0 %v667
      %v669 = vpop.f32.mrf.mxu0
      %v670 = vadd.f32 %v568, %v669
      %v671 = vand.u32 %v308, 4294901760
      %v672 = vsub.f32 %v308, %v671
      %673 = vmatmul.f32.gmra.mxu0 %v672
      %v674 = vpop.f32.mrf.mxu0
      %v675 = vadd.f32 %v572, %v674
      %v676 = vand.u32 %v311, 4294901760
      %v677 = vsub.f32 %v311, %v676
      %678 = vmatmul.f32.gmra.mxu0 %v677
      %v679 = vpop.f32.mrf.mxu0
      %v680 = vadd.f32 %v576, %v679
      %v681 = vand.u32 %v314, 4294901760
      %v682 = vsub.f32 %v314, %v681
      %683 = vmatmul.f32.gmra.mxu0 %v682
      %v684 = vpop.f32.mrf.mxu0
      %v685 = vadd.f32 %v580, %v684
      %v686 = vand.u32 %v317, 4294901760
      %v687 = vsub.f32 %v317, %v686
      %688 = vmatmul.f32.gmra.mxu0 %v687
      %v689 = vpop.f32.mrf.mxu0
      %v690 = vadd.f32 %v584, %v689
      %v691 = vand.u32 %v320, 4294901760
      %v692 = vsub.f32 %v320, %v691
      %693 = vmatmul.f32.gmra.mxu0 %v692
      %v694 = vpop.f32.mrf.mxu0
      %v695 = vadd.f32 %v588, %v694
      %v696 = vand.u32 %v323, 4294901760
      %v697 = vsub.f32 %v323, %v696
      %698 = vmatmul.f32.gmra.mxu0 %v697
      %v699 = vpop.f32.mrf.mxu0
      %v700 = vadd.f32 %v592, %v699
      %v701 = vand.u32 %v326, 4294901760
      %v702 = vsub.f32 %v326, %v701
      %703 = vmatmul.f32.gmra.mxu0 %v702
      %v704 = vpop.f32.mrf.mxu0
      %v705 = vadd.f32 %v596, %v704
      %v706 = vand.u32 %v329, 4294901760
      %v707 = vsub.f32 %v329, %v706
      %708 = vmatmul.f32.gmra.mxu0 %v707
      %v709 = vpop.f32.mrf.mxu0
      %v710 = vadd.f32 %v600, %v709
      %v711 = vand.u32 %v332, 4294901760
      %v712 = vsub.f32 %v332, %v711
      %713 = vmatmul.f32.gmra.mxu0 %v712
      %v714 = vpop.f32.mrf.mxu0
      %v715 = vadd.f32 %v604, %v714
      %v716 = vand.u32 %v335, 4294901760
      %v717 = vsub.f32 %v335, %v716
      %718 = vmatmul.f32.gmra.mxu0 %v717
      %v719 = vpop.f32.mrf.mxu0
      %v720 = vadd.f32 %v608, %v719
      %v721 = vand.u32 %v338, 4294901760
      %v722 = vsub.f32 %v338, %v721
      %723 = vmatmul.f32.gmra.mxu0 %v722
      %v724 = vpop.f32.mrf.mxu0
      %v725 = vadd.f32 %v612, %v724
      %726 = vdwg.mxu0
      %727 = vmatpush.msra.mxu0 0.0
      %728 = vmatpush.msra.mxu0 0.0
      %729 = vmatpush.msra.mxu0 0.0
      %730 = vmatpush.msra.mxu0 0.0
      %731 = vmatpush.msra.mxu0 0.0
      %732 = vmatpush.msra.mxu0 0.0
      %733 = vmatpush.msra.mxu0 0.0
      %734 = vmatpush.msra.mxu0 0.0
      %v735 = vand.u32 %v210, 4294901760
      %736 = vmatpush.msra.mxu0 %v735
      %v737 = vand.u32 %v209, 4294901760
      %738 = vmatpush.msra.mxu0 %v737
      %v739 = vand.u32 %v208, 4294901760
      %740 = vmatpush.msra.mxu0 %v739
      %v741 = vand.u32 %v207, 4294901760
      %742 = vmatpush.msra.mxu0 %v741
      %v743 = vand.u32 %v206, 4294901760
      %744 = vmatpush.msra.mxu0 %v743
      %v745 = vand.u32 %v205, 4294901760
      %746 = vmatpush.msra.mxu0 %v745
      %v747 = vand.u32 %v204, 4294901760
      %748 = vmatpush.msra.mxu0 %v747
      %v749 = vand.u32 %v203, 4294901760
      %750 = vmatpush.msra.mxu0 %v749
      %v751 = vand.u32 %v293, 4294901760
      %v752 = vsub.f32 %v293, %v751
      %v753 = vand.u32 %v752, 4294901760
      %754 = vmatmul.f32.gmra.mxu0 %v753
      %v755 = vpop.f32.mrf.mxu0
      %v756 = vadd.f32 %v650, %v755
      %v757 = vand.u32 %v296, 4294901760
      %v758 = vsub.f32 %v296, %v757
      %v759 = vand.u32 %v758, 4294901760
      %760 = vmatmul.f32.gmra.mxu0 %v759
      %v761 = vpop.f32.mrf.mxu0
      %v762 = vadd.f32 %v655, %v761
      %v763 = vand.u32 %v299, 4294901760
      %v764 = vsub.f32 %v299, %v763
      %v765 = vand.u32 %v764, 4294901760
      %766 = vmatmul.f32.gmra.mxu0 %v765
      %v767 = vpop.f32.mrf.mxu0
      %v768 = vadd.f32 %v660, %v767
      %v769 = vand.u32 %v302, 4294901760
      %v770 = vsub.f32 %v302, %v769
      %v771 = vand.u32 %v770, 4294901760
      %772 = vmatmul.f32.gmra.mxu0 %v771
      %v773 = vpop.f32.mrf.mxu0
      %v774 = vadd.f32 %v665, %v773
      %v775 = vand.u32 %v305, 4294901760
      %v776 = vsub.f32 %v305, %v775
      %v777 = vand.u32 %v776, 4294901760
      %778 = vmatmul.f32.gmra.mxu0 %v777
      %v779 = vpop.f32.mrf.mxu0
      %v780 = vadd.f32 %v670, %v779
      %v781 = vand.u32 %v308, 4294901760
      %v782 = vsub.f32 %v308, %v781
      %v783 = vand.u32 %v782, 4294901760
      %784 = vmatmul.f32.gmra.mxu0 %v783
      %v785 = vpop.f32.mrf.mxu0
      %v786 = vadd.f32 %v675, %v785
      %v787 = vand.u32 %v311, 4294901760
      %v788 = vsub.f32 %v311, %v787
      %v789 = vand.u32 %v788, 4294901760
      %790 = vmatmul.f32.gmra.mxu0 %v789
      %v791 = vpop.f32.mrf.mxu0
      %v792 = vadd.f32 %v680, %v791
      %v793 = vand.u32 %v314, 4294901760
      %v794 = vsub.f32 %v314, %v793
      %v795 = vand.u32 %v794, 4294901760
      %796 = vmatmul.f32.gmra.mxu0 %v795
      %v797 = vpop.f32.mrf.mxu0
      %v798 = vadd.f32 %v685, %v797
      %v799 = vand.u32 %v317, 4294901760
      %v800 = vsub.f32 %v317, %v799
      %v801 = vand.u32 %v800, 4294901760
      %802 = vmatmul.f32.gmra.mxu0 %v801
      %v803 = vpop.f32.mrf.mxu0
      %v804 = vadd.f32 %v690, %v803
      %v805 = vand.u32 %v320, 4294901760
      %v806 = vsub.f32 %v320, %v805
      %v807 = vand.u32 %v806, 4294901760
      %808 = vmatmul.f32.gmra.mxu0 %v807
      %v809 = vpop.f32.mrf.mxu0
      %v810 = vadd.f32 %v695, %v809
      %v811 = vand.u32 %v323, 4294901760
      %v812 = vsub.f32 %v323, %v811
      %v813 = vand.u32 %v812, 4294901760
      %814 = vmatmul.f32.gmra.mxu0 %v813
      %v815 = vpop.f32.mrf.mxu0
      %v816 = vadd.f32 %v700, %v815
      %v817 = vand.u32 %v326, 4294901760
      %v818 = vsub.f32 %v326, %v817
      %v819 = vand.u32 %v818, 4294901760
      %820 = vmatmul.f32.gmra.mxu0 %v819
      %v821 = vpop.f32.mrf.mxu0
      %v822 = vadd.f32 %v705, %v821
      %v823 = vand.u32 %v329, 4294901760
      %v824 = vsub.f32 %v329, %v823
      %v825 = vand.u32 %v824, 4294901760
      %826 = vmatmul.f32.gmra.mxu0 %v825
      %v827 = vpop.f32.mrf.mxu0
      %v828 = vadd.f32 %v710, %v827
      %v829 = vand.u32 %v332, 4294901760
      %v830 = vsub.f32 %v332, %v829
      %v831 = vand.u32 %v830, 4294901760
      %832 = vmatmul.f32.gmra.mxu0 %v831
      %v833 = vpop.f32.mrf.mxu0
      %v834 = vadd.f32 %v715, %v833
      %v835 = vand.u32 %v335, 4294901760
      %v836 = vsub.f32 %v335, %v835
      %v837 = vand.u32 %v836, 4294901760
      %838 = vmatmul.f32.gmra.mxu0 %v837
      %v839 = vpop.f32.mrf.mxu0
      %v840 = vadd.f32 %v720, %v839
      %v841 = vand.u32 %v338, 4294901760
      %v842 = vsub.f32 %v338, %v841
      %v843 = vand.u32 %v842, 4294901760
      %844 = vmatmul.f32.gmra.mxu0 %v843
      %v845 = vpop.f32.mrf.mxu0
      %v846 = vadd.f32 %v725, %v845
      %847 = vdwg.mxu0
      %848 = vmatpush.msra.mxu0 0.0
      %849 = vmatpush.msra.mxu0 0.0
      %850 = vmatpush.msra.mxu0 0.0
      %851 = vmatpush.msra.mxu0 0.0
      %852 = vmatpush.msra.mxu0 0.0
      %853 = vmatpush.msra.mxu0 0.0
      %854 = vmatpush.msra.mxu0 0.0
      %855 = vmatpush.msra.mxu0 0.0
      %v856 = vand.u32 %v210, 4294901760
      %v857 = vsub.f32 %v210, %v856
      %v858 = vand.u32 %v857, 4294901760
      %859 = vmatpush.msra.mxu0 %v858
      %v860 = vand.u32 %v209, 4294901760
      %v861 = vsub.f32 %v209, %v860
      %v862 = vand.u32 %v861, 4294901760
      %863 = vmatpush.msra.mxu0 %v862
      %v864 = vand.u32 %v208, 4294901760
      %v865 = vsub.f32 %v208, %v864
      %v866 = vand.u32 %v865, 4294901760
      %867 = vmatpush.msra.mxu0 %v866
      %v868 = vand.u32 %v207, 4294901760
      %v869 = vsub.f32 %v207, %v868
      %v870 = vand.u32 %v869, 4294901760
      %871 = vmatpush.msra.mxu0 %v870
      %v872 = vand.u32 %v206, 4294901760
      %v873 = vsub.f32 %v206, %v872
      %v874 = vand.u32 %v873, 4294901760
      %875 = vmatpush.msra.mxu0 %v874
      %v876 = vand.u32 %v205, 4294901760
      %v877 = vsub.f32 %v205, %v876
      %v878 = vand.u32 %v877, 4294901760
      %879 = vmatpush.msra.mxu0 %v878
      %v880 = vand.u32 %v204, 4294901760
      %v881 = vsub.f32 %v204, %v880
      %v882 = vand.u32 %v881, 4294901760
      %883 = vmatpush.msra.mxu0 %v882
      %v884 = vand.u32 %v203, 4294901760
      %v885 = vsub.f32 %v203, %v884
      %v886 = vand.u32 %v885, 4294901760
      %887 = vmatpush.msra.mxu0 %v886
      %v888 = vand.u32 %v293, 4294901760
      %889 = vmatmul.f32.gmra.mxu0 %v888
      %v890 = vpop.f32.mrf.mxu0
      %v891 = vadd.f32 %v756, %v890
      %v892 = vand.u32 %v296, 4294901760
      %893 = vmatmul.f32.gmra.mxu0 %v892
      %v894 = vpop.f32.mrf.mxu0
      %v895 = vadd.f32 %v762, %v894
      %v896 = vand.u32 %v299, 4294901760
      %897 = vmatmul.f32.gmra.mxu0 %v896
      %v898 = vpop.f32.mrf.mxu0
      %v899 = vadd.f32 %v768, %v898
      %v900 = vand.u32 %v302, 4294901760
      %901 = vmatmul.f32.gmra.mxu0 %v900
      %v902 = vpop.f32.mrf.mxu0
      %v903 = vadd.f32 %v774, %v902
      %v904 = vand.u32 %v305, 4294901760
      %905 = vmatmul.f32.gmra.mxu0 %v904
      %v906 = vpop.f32.mrf.mxu0
      %v907 = vadd.f32 %v780, %v906
      %v908 = vand.u32 %v308, 4294901760
      %909 = vmatmul.f32.gmra.mxu0 %v908
      %v910 = vpop.f32.mrf.mxu0
      %v911 = vadd.f32 %v786, %v910
      %v912 = vand.u32 %v311, 4294901760
      %913 = vmatmul.f32.gmra.mxu0 %v912
      %v914 = vpop.f32.mrf.mxu0
      %v915 = vadd.f32 %v792, %v914
      %v916 = vand.u32 %v314, 4294901760
      %917 = vmatmul.f32.gmra.mxu0 %v916
      %v918 = vpop.f32.mrf.mxu0
      %v919 = vadd.f32 %v798, %v918
      %v920 = vand.u32 %v317, 4294901760
      %921 = vmatmul.f32.gmra.mxu0 %v920
      %v922 = vpop.f32.mrf.mxu0
      %v923 = vadd.f32 %v804, %v922
      %v924 = vand.u32 %v320, 4294901760
      %925 = vmatmul.f32.gmra.mxu0 %v924
      %v926 = vpop.f32.mrf.mxu0
      %v927 = vadd.f32 %v810, %v926
      %v928 = vand.u32 %v323, 4294901760
      %929 = vmatmul.f32.gmra.mxu0 %v928
      %v930 = vpop.f32.mrf.mxu0
      %v931 = vadd.f32 %v816, %v930
      %v932 = vand.u32 %v326, 4294901760
      %933 = vmatmul.f32.gmra.mxu0 %v932
      %v934 = vpop.f32.mrf.mxu0
      %v935 = vadd.f32 %v822, %v934
      %v936 = vand.u32 %v329, 4294901760
      %937 = vmatmul.f32.gmra.mxu0 %v936
      %v938 = vpop.f32.mrf.mxu0
      %v939 = vadd.f32 %v828, %v938
      %v940 = vand.u32 %v332, 4294901760
      %941 = vmatmul.f32.gmra.mxu0 %v940
      %v942 = vpop.f32.mrf.mxu0
      %v943 = vadd.f32 %v834, %v942
      %v944 = vand.u32 %v335, 4294901760
      %945 = vmatmul.f32.gmra.mxu0 %v944
      %v946 = vpop.f32.mrf.mxu0
      %v947 = vadd.f32 %v840, %v946
      %v948 = vand.u32 %v338, 4294901760
      %949 = vmatmul.f32.gmra.mxu0 %v948
      %v950 = vpop.f32.mrf.mxu0
      %v951 = vadd.f32 %v846, %v950
      %952 = vdwg.mxu0
      %953 = vmatpush.msra.mxu0 0.0
      %954 = vmatpush.msra.mxu0 0.0
      %955 = vmatpush.msra.mxu0 0.0
      %956 = vmatpush.msra.mxu0 0.0
      %957 = vmatpush.msra.mxu0 0.0
      %958 = vmatpush.msra.mxu0 0.0
      %959 = vmatpush.msra.mxu0 0.0
      %960 = vmatpush.msra.mxu0 0.0
      %v961 = vand.u32 %v210, 4294901760
      %962 = vmatpush.msra.mxu0 %v961
      %v963 = vand.u32 %v209, 4294901760
      %964 = vmatpush.msra.mxu0 %v963
      %v965 = vand.u32 %v208, 4294901760
      %966 = vmatpush.msra.mxu0 %v965
      %v967 = vand.u32 %v207, 4294901760
      %968 = vmatpush.msra.mxu0 %v967
      %v969 = vand.u32 %v206, 4294901760
      %970 = vmatpush.msra.mxu0 %v969
      %v971 = vand.u32 %v205, 4294901760
      %972 = vmatpush.msra.mxu0 %v971
      %v973 = vand.u32 %v204, 4294901760
      %974 = vmatpush.msra.mxu0 %v973
      %v975 = vand.u32 %v203, 4294901760
      %976 = vmatpush.msra.mxu0 %v975
      %v977 = vand.u32 %v293, 4294901760
      %978 = vmatmul.f32.gmra.mxu0 %v977
      %v979 = vpop.f32.mrf.mxu0
      %v980 = vadd.f32 %v891, %v979
      %v981 = vand.u32 %v296, 4294901760
      %982 = vmatmul.f32.gmra.mxu0 %v981
      %v983 = vpop.f32.mrf.mxu0
      %v984 = vadd.f32 %v895, %v983
      %v985 = vand.u32 %v299, 4294901760
      %986 = vmatmul.f32.gmra.mxu0 %v985
      %v987 = vpop.f32.mrf.mxu0
      %v988 = vadd.f32 %v899, %v987
      %v989 = vand.u32 %v302, 4294901760
      %990 = vmatmul.f32.gmra.mxu0 %v989
      %v991 = vpop.f32.mrf.mxu0
      %v992 = vadd.f32 %v903, %v991
      %v993 = vand.u32 %v305, 4294901760
      %994 = vmatmul.f32.gmra.mxu0 %v993
      %v995 = vpop.f32.mrf.mxu0
      %v996 = vadd.f32 %v907, %v995
      %v997 = vand.u32 %v308, 4294901760
      %998 = vmatmul.f32.gmra.mxu0 %v997
      %v999 = vpop.f32.mrf.mxu0
      %v1000 = vadd.f32 %v911, %v999
      %v1001 = vand.u32 %v311, 4294901760
      %1002 = vmatmul.f32.gmra.mxu0 %v1001
      %v1003 = vpop.f32.mrf.mxu0
      %v1004 = vadd.f32 %v915, %v1003
      %v1005 = vand.u32 %v314, 4294901760
      %1006 = vmatmul.f32.gmra.mxu0 %v1005
      %v1007 = vpop.f32.mrf.mxu0
      %v1008 = vadd.f32 %v919, %v1007
      %v1009 = vand.u32 %v317, 4294901760
      %1010 = vmatmul.f32.gmra.mxu0 %v1009
      %v1011 = vpop.f32.mrf.mxu0
      %v1012 = vadd.f32 %v923, %v1011
      %v1013 = vand.u32 %v320, 4294901760
      %1014 = vmatmul.f32.gmra.mxu0 %v1013
      %v1015 = vpop.f32.mrf.mxu0
      %v1016 = vadd.f32 %v927, %v1015
      %v1017 = vand.u32 %v323, 4294901760
      %1018 = vmatmul.f32.gmra.mxu0 %v1017
      %v1019 = vpop.f32.mrf.mxu0
      %v1020 = vadd.f32 %v931, %v1019
      %v1021 = vand.u32 %v326, 4294901760
      %1022 = vmatmul.f32.gmra.mxu0 %v1021
      %v1023 = vpop.f32.mrf.mxu0
      %v1024 = vadd.f32 %v935, %v1023
      %v1025 = vand.u32 %v329, 4294901760
      %1026 = vmatmul.f32.gmra.mxu0 %v1025
      %v1027 = vpop.f32.mrf.mxu0
      %v1028 = vadd.f32 %v939, %v1027
      %v1029 = vand.u32 %v332, 4294901760
      %1030 = vmatmul.f32.gmra.mxu0 %v1029
      %v1031 = vpop.f32.mrf.mxu0
      %v1032 = vadd.f32 %v943, %v1031
      %v1033 = vand.u32 %v335, 4294901760
      %1034 = vmatmul.f32.gmra.mxu0 %v1033
      %v1035 = vpop.f32.mrf.mxu0
      %v1036 = vadd.f32 %v947, %v1035
      %v1037 = vand.u32 %v338, 4294901760
      %1038 = vmatmul.f32.gmra.mxu0 %v1037
      %v1039 = vpop.f32.mrf.mxu0
      %v1040 = vadd.f32 %v951, %v1039
      %1041 = vdwg.mxu0
      %vm1042 = vcmask 64512
      %1043 = vst.msk [vmem:[%s170] sm:$0xff] %vm1042, %v980
      %1044 = vst.msk [vmem:[%s170 + $0x8] sm:$0xff] %vm1042, %v984
      %1045 = vst.msk [vmem:[%s170 + $0x10] sm:$0xff] %vm1042, %v988
      %1046 = vst.msk [vmem:[%s170 + $0x18] sm:$0xff] %vm1042, %v992
      %1047 = vst.msk [vmem:[%s170 + $0x20] sm:$0xff] %vm1042, %v996
      %1048 = vst.msk [vmem:[%s170 + $0x28] sm:$0xff] %vm1042, %v1000
      %1049 = vst.msk [vmem:[%s170 + $0x30] sm:$0xff] %vm1042, %v1004
      %1050 = vst.msk [vmem:[%s170 + $0x38] sm:$0xff] %vm1042, %v1008
      %1051 = vst.msk [vmem:[%s170 + $0x40] sm:$0xff] %vm1042, %v1012
      %1052 = vst.msk [vmem:[%s170 + $0x48] sm:$0xff] %vm1042, %v1016
      %1053 = vst.msk [vmem:[%s170 + $0x50] sm:$0xff] %vm1042, %v1020
      %1054 = vst.msk [vmem:[%s170 + $0x58] sm:$0xff] %vm1042, %v1024
      %1055 = vst.msk [vmem:[%s170 + $0x60] sm:$0xff] %vm1042, %v1028
      %1056 = vst.msk [vmem:[%s170 + $0x68] sm:$0xff] %vm1042, %v1032
      %1057 = vst.msk [vmem:[%s170 + $0x70] sm:$0xff] %vm1042, %v1036
      %1058 = vst.msk [vmem:[%s170 + $0x78] sm:$0xff] %vm1042, %v1040
      %p1059 = scmp.lt.s32.totalorder %s14, 1
      %s1060 = scalar_select %p1059, %s14, 1
      %s1061 = smul.addr %s1060, 16
      %s1062 = smul.addr %s1061, 8
      %s1063 = scalar_lea.vmem %s3, %s1062
      // Predicated region
      $region33: #{cheby_conv_forward.3} parent=31 // pred_check
        %p1064 = pneg %p100
      $region34: #{cheby_conv_forward.3} parent=31 // pred_check_branch
        %1066 = sbr.rel (%p1064) target = $region36
      $region35: #{cheby_conv_forward.3} parent=31 // pred_region
        _
      $region36: #{cheby_conv_forward.3} parent=31 // pred_fallthru
        _
    $region32: #{cheby_conv_forward.3} parent=5 // pred_fallthru
      _
    %p1067 = scmp.le.s32.totalorder 2, %s9
    // Predicated region
    $region37: #{cheby_conv_forward.3} parent=5 // pred_check
      %p1068 = pneg %p1067
    $region38: #{cheby_conv_forward.3} parent=5 // pred_check_branch
      %1070 = sbr.rel (%p1068) target = $region40
    $region39: #{cheby_conv_forward.3} parent=5 // pred_region
      %s1071 = ssub.s32 %s9, 2
      // Predicated region
      $region41: #{cheby_conv_forward.3} parent=39 // pred_check
        %p1072 = pneg %p106
      $region42: #{cheby_conv_forward.3} parent=39 // pred_check_branch
        %1074 = sbr.rel (%p1072) target = $region44
      $region43: #{cheby_conv_forward.3} parent=39 // pred_region
        %p1075 = scmp.lt.s32.totalorder %s15, 1
        %s1076 = scalar_select %p1075, %s15, 1
        %s1077 = smul.addr %s1076, 16
        %s1078 = smul.addr %s1077, 8
        %s1079 = scalar_lea.vmem %s3, %s1078
      $region44: #{cheby_conv_forward.3} parent=39 // pred_fallthru
        _
    $region40: #{cheby_conv_forward.3} parent=5 // pred_fallthru
      _
  $region6: #{cheby_conv_forward.3} parent=0 // loop_footer
    %s13 = sadd.s32 1, %s9
  $region7: #{cheby_conv_forward.3} parent=0 // loop_footer_branch
    %8 = sbr.rel target = $region3
  $region8: #{cheby_conv_forward.3} parent=0 // loop_exit
    _

</llo_original>
